<compile_context>
chip_gen: v7x
topology: tpu7x:2x2x1
jax: 0.10.0
libtpu: 0.0.40
codegen_flags: <defaults>
</compile_context>

<pallas_src>
import jax
import jax.numpy as jnp
import numpy as np
from jax.experimental import pallas as pl
from jax.experimental.pallas import tpu as pltpu

K_SIZE = 5            # ECA conv kernel size (static)
LANES = 128           # TPU vreg lane count
BLOCK_LO = 2 << 20    # aim for >= 2 MiB input blocks (roofline ~saturates here)
BLOCK_HI = 8 << 20    # never exceed 8 MiB input blocks in single-pass mode


# ---------------------------------------------------------------------------
# Kernels
# ---------------------------------------------------------------------------
def eca_fused_kernel(x_ref, g_ref, o_ref):
    """Single-pass: block = (bt, M, Cl) = whole (row-packed) batch elements.
    sum over rows (f32) -> gate = sigmoid(sum @ G) -> out = x * gate."""
    s = jnp.sum(x_ref[...], axis=1, dtype=jnp.float32)                   # (bt, Cl)
    gate = jax.nn.sigmoid(
        jnp.dot(s, g_ref[...], preferred_element_type=jnp.float32))      # (bt, Cl)
    o_ref[...] = x_ref[...] * gate.astype(o_ref.dtype)[:, None, :]


def eca_reduce_kernel(x_ref, s_ref):
    """Two-pass, pass 1: accumulate per-lane sums across row blocks (f32)."""
    @pl.when(pl.program_id(1) == 0)
    def _():
        s_ref[...] = jnp.zeros_like(s_ref)
    s_ref[...] += jnp.sum(x_ref[...], axis=1, keepdims=True, dtype=jnp.float32)


def eca_scale_kernel(x_ref, g_ref, o_ref):
    """Two-pass, pass 2: stream x again and scale by the per-lane gate."""
    o_ref[...] = x_ref[...] * g_ref[...]


# ---------------------------------------------------------------------------
# Wrapper helpers (plain JAX / Python, executed once per call, not per step)
# ---------------------------------------------------------------------------
def _tpu_vmem_capacity():
    try:
        return int(pltpu.get_tpu_info().vmem_capacity_bytes)
    except Exception:
        return 64 << 20          # conservative: assume the smallest (v7x-class)


def _conv_matrix(w, C, L):
    """(C, C) matrix A with A[cin, cout] = w[cin - cout + pad] / L (banded,
    zero padding), so pooled_sum @ A == Conv1d(1,1,K,pad,bias=False)(mean_L(x))."""
    K = w.shape[0]
    pad = (K - 1) // 2
    ci = jnp.arange(C)[:, None]          # input channel
    cj = jnp.arange(C)[None, :]          # output channel
    d = ci - cj + pad
    valid = (d >= 0) & (d < K)
    A = jnp.where(valid, w[jnp.clip(d, 0, K - 1)], 0.0)
    return A.astype(jnp.float32) / float(L)


def _pick_block_batch(B, slab_bytes, block_hi):
    """Smallest divisor of B whose folded block reaches BLOCK_LO while staying
    under block_hi, keeping >= 2 grid steps when B >= 2."""
    if B == 1:
        return 1
    best = 1
    for d in range(1, B // 2 + 1):
        if B % d:
            continue
        if d * slab_bytes > block_hi:
            break
        best = d
        if d * slab_bytes >= BLOCK_LO:
            break
    return best


def _eca_single_pass(xv, G, ceiling, block_hi):
    """One pallas_call: grid over batch, whole (M, Cl) slab per batch element."""
    B, M, Cl = xv.shape
    itemsize = xv.dtype.itemsize
    slab = M * Cl * itemsize
    g_bytes = 2 * Cl * Cl * 4
    bt = _pick_block_batch(B, slab, block_hi)

    # Double-buffered in + out blocks, resident G, headroom — capped to chip VMEM.
    need = 4 * bt * slab + g_bytes + (2 << 20)
    vmem_limit = int(min(need, ceiling)) if need > (16 << 20) else None

    return pl.pallas_call(
        eca_fused_kernel,
        out_shape=jax.ShapeDtypeStruct((B, M, Cl), xv.dtype),
        grid=(B // bt,),
        in_specs=[
            pl.BlockSpec((bt, M, Cl), lambda b: (b, 0, 0)),
            pl.BlockSpec((Cl, Cl), lambda b: (0, 0)),   # constant index -> resident
        ],
        out_specs=pl.BlockSpec((bt, M, Cl), lambda b: (b, 0, 0)),
        compiler_params=pltpu.CompilerParams(
            dimension_semantics=("parallel",),
            vmem_limit_bytes=vmem_limit),
        cost_estimate=pl.CostEstimate(
            flops=int(2 * B * M * Cl + 2 * B * Cl * Cl),
            transcendentals=int(B * Cl),
            bytes_accessed=int(2 * B * M * Cl * itemsize)),
    )(xv, G)


def _eca_two_pass(xv, G, ceiling):
    """Row-split escape hatch: reduce kernel -> tiny JAX gate -> scale kernel.
    Always fits VMEM (blocks ~4 MiB) and exposes row parallelism for small B."""
    B, M, Cl = xv.shape
    dtype = xv.dtype
    itemsize = dtype.itemsize

    # ~4 MiB blocks, rows a multiple of 8; pad rows with zeros (zeros do not
    # change the sum and the padded rows are sliced off at the end).
    tr = max(8, ((4 << 20) // (Cl * itemsize)) // 8 * 8)
    tr = min(tr, ((M + 7) // 8) * 8)
    Mp = ((M + tr - 1) // tr) * tr
    if Mp != M:
        xv = jnp.pad(xv, ((0, 0), (0, Mp - M), (0, 0)))
    nr = Mp // tr

    blk = tr * Cl * itemsize
    need1 = 2 * blk + (2 << 20)
    need2 = 4 * blk + (2 << 20)
    lim1 = int(min(need1, ceiling)) if need1 > (16 << 20) else None
    lim2 = int(min(need2, ceiling)) if need2 > (16 << 20) else None

    # Pass 1: per-batch, per-lane sums with f32 accumulation across row blocks.
    sums = pl.pallas_call(
        eca_reduce_kernel,
        out_shape=jax.ShapeDtypeStruct((B, 1, Cl), jnp.float32),
        grid=(B, nr),
        in_specs=[pl.BlockSpec((1, tr, Cl), lambda b, r: (b, r, 0))],
        out_specs=pl.BlockSpec((1, 1, Cl), lambda b, r: (b, 0, 0)),
        compiler_params=pltpu.CompilerParams(
            dimension_semantics=("parallel", "arbitrary"),
            vmem_limit_bytes=lim1),
        cost_estimate=pl.CostEstimate(
            flops=int(B * Mp * Cl),
            transcendentals=0,
            bytes_accessed=int(B * Mp * Cl * itemsize)),
    )(xv)

    # Tiny gate computation in plain JAX (conv + 1/L + lane tiling folded in G).
    gate = jax.nn.sigmoid(
        jnp.dot(sums[:, 0, :], G, preferred_element_type=jnp.float32))
    gate = gate.astype(dtype)[:, None, :]                         # (B, 1, Cl)

    # Pass 2: stream x again and apply the broadcasted per-lane gate.
    out = pl.pallas_call(
        eca_scale_kernel,
        out_shape=jax.ShapeDtypeStruct((B, Mp, Cl), dtype),
        grid=(B, nr),
        in_specs=[pl.BlockSpec((1, tr, Cl), lambda b, r: (b, r, 0)),
                  pl.BlockSpec((1, 1, Cl), lambda b, r: (b, 0, 0))],
        out_specs=pl.BlockSpec((1, tr, Cl), lambda b, r: (b, r, 0)),
        compiler_params=pltpu.CompilerParams(
            dimension_semantics=("parallel", "parallel"),
            vmem_limit_bytes=lim2),
        cost_estimate=pl.CostEstimate(
            flops=int(B * Mp * Cl),
            transcendentals=0,
            bytes_accessed=int(2 * B * Mp * Cl * itemsize)),
    )(xv, gate)

    return out[:, :M, :] if Mp != M else out


def _eca_scale(xv, G, force_two_pass=False):
    """Dispatch between the fused single-pass kernel and the two-pass path."""
    B, M, Cl = xv.shape
    itemsize = xv.dtype.itemsize
    slab = M * Cl * itemsize
    cap = _tpu_vmem_capacity()
    ceiling = (cap * 3) // 4                   # ~48 MiB on v7x, ~96 MiB on v5e/v6e
    two_tc_chip = cap <= (64 << 20)            # v7x-class: 2 TensorCores per chip
    g_bytes = 2 * Cl * Cl * 4
    block_hi = min(BLOCK_HI, max(1 << 20, (ceiling - g_bytes - (4 << 20)) // 4))

    if (force_two_pass
            or slab > block_hi                              # would not fit VMEM
            or (two_tc_chip and B == 1 and slab > (4 << 20))):  # feed both TCs
        return _eca_two_pass(xv, G, ceiling)
    return _eca_single_pass(xv, G, ceiling, block_hi)


def eca_forward(x, w, *, force_two_pass=False):
    """ECA forward.  x: (B, L, C), w: (K,) Conv1d(1,1,K,bias=False) weights."""
    B, L, C = x.shape

    # Pad channels to a divisor (C<=128) or a multiple (C>128) of the 128-lane
    # vreg so every load/store is lane-dense (no masked partial stores).
    if C <= LANES:
        Cp = 1
        while Cp < C:
            Cp *= 2                            # power of two -> divides 128
    else:
        Cp = ((C + LANES - 1) // LANES) * LANES

    # Banded conv matrix over padded channels.  Padded channels carry a pooled
    # sum of exactly 0, reproducing the Conv1d zero padding; 1/L uses the TRUE
    # L.  (O(Cp^2) weights; fine for ECA-sized channel counts.)
    A = _conv_matrix(w, Cp, L)

    xp = x if Cp == C else jnp.pad(x, ((0, 0), (0, 0), (0, Cp - C)))

    if Cp < LANES:
        # Lane-dense packed view: pad L so L*Cp is 128-aligned, then view the
        # contiguous (L, Cp) slab as (M, 128).  Lane q always holds channel
        # q % Cp, so G[q, q'] = A[q % Cp, q' % Cp] performs the conv AND tiles
        # the gate across all 128 lanes in one tiny matmul.
        per = LANES // Cp
        Lp = ((L + per - 1) // per) * per
        if Lp != L:
            xp = jnp.pad(xp, ((0, 0), (0, Lp - L), (0, 0)))
        M = (Lp * Cp) // LANES
        lane_ch = jnp.arange(LANES) % Cp
        G = A[lane_ch[:, None], lane_ch[None, :]]
        out = _eca_scale(xp.reshape(B, M, LANES), G, force_two_pass)
        out = out.reshape(B, Lp, Cp)
    else:
        out = _eca_scale(xp, A, force_two_pass)

    if out.shape[1] != L or out.shape[2] != C:
        out = out[:, :L, :C]
    return out


# ---------------------------------------------------------------------------
# Pure-JAX reference mirroring the PyTorch module
# ---------------------------------------------------------------------------
def eca_reference(x, w):
    B, L, C = x.shape
    K = w.shape[0]
    pad = (K - 1) // 2
    pooled = jnp.mean(x.astype(jnp.float32), axis=1)             # (B, C)
    padded = jnp.pad(pooled, ((0, 0), (pad, pad)))               # (B, C + 2*pad)
    y = jnp.zeros((B, C), jnp.float32)
    for j in range(K):
        y = y + w[j] * padded[:, j:j + C]                        # cross-correlation
    y = jax.nn.sigmoid(y)
    return (x * y[:, None, :].astype(x.dtype)).astype(x.dtype)


if __name__ == "__main__":
    key = jax.random.PRNGKey(0)
    kx1, kx2, kx3, kw = jax.random.split(key, 4)

    # Deterministic Conv1d(1,1,5,bias=False)-style weight init.
    bound = 1.0 / np.sqrt(K_SIZE)
    w = jax.random.uniform(kw, (K_SIZE,), jnp.float32, minval=-bound, maxval=bound)

    # 1) Lane-packed path, no padding needed (L*C = 128).
    x1 = jax.random.normal(kx1, (2, 16, 8), jnp.float32)
    o1 = jax.block_until_ready(eca_forward(x1, w))
    np.testing.assert_allclose(np.asarray(o1), np.asarray(eca_reference(x1, w)),
                               rtol=1e-5, atol=1e-5)

    # 2) L padding (L*C = 192, not 128-aligned) -> still lane-dense.
    x2 = jax.random.normal(kx2, (2, 24, 8), jnp.float32)
    o2 = jax.block_until_ready(eca_forward(x2, w))
    np.testing.assert_allclose(np.asarray(o2), np.asarray(eca_reference(x2, w)),
                               rtol=1e-5, atol=1e-5)

    # 3) Channel padding (C=6 -> 8) -> still lane-dense.
    x3 = jax.random.normal(kx3, (2, 16, 6), jnp.float32)
    o3 = jax.block_until_ready(eca_forward(x3, w))
    np.testing.assert_allclose(np.asarray(o3), np.asarray(eca_reference(x3, w)),
                               rtol=1e-5, atol=1e-5)

    # 4) Exercise the large-L / small-B two-pass path (reduce + scale kernels).
    o4 = jax.block_until_ready(eca_forward(x1, w, force_two_pass=True))
    np.testing.assert_allclose(np.asarray(o4), np.asarray(eca_reference(x1, w)),
                               rtol=1e-5, atol=1e-5)

    print("KERNEL_OK")
</pallas_src>

<mosaic_0001>
module attributes {stable_mosaic.version = 11 : i64} {
  func.func @eca_fused_kernel(%arg0: i32, %arg1: memref<1x1x128xf32, #tpu.memory_space<vmem>>, %arg2: memref<128x128xf32, #tpu.memory_space<vmem>>, %arg3: memref<1x1x128xf32, #tpu.memory_space<vmem>>) attributes {dimension_semantics = [#tpu.dimension_semantics<parallel>], iteration_bounds = array<i64: 2>, scalar_prefetch = 0 : i64, scratch_operands = 0 : i64, tpu.core_type = #tpu.core_type<tc>, window_params = [{transform_indices = @transform_0, window_bounds = array<i64: 1, 1, 128>}, {pipeline_mode = #tpu.pipeline_mode<synchronous>, transform_indices = @transform_1, window_bounds = array<i64: 128, 128>}, {transform_indices = @transform_2, window_bounds = array<i64: 1, 1, 128>}]} {
    %c0 = arith.constant 0 : index
    %c0_0 = arith.constant 0 : index
    %c0_1 = arith.constant 0 : index
    %0 = vector.load %arg1[%c0, %c0_0, %c0_1] : memref<1x1x128xf32, #tpu.memory_space<vmem>>, vector<1x1x128xf32>
    %cst = arith.constant dense<0.000000e+00> : vector<1x128xf32>
    %1 = vector.multi_reduction <add>, %0, %cst [1] : vector<1x1x128xf32> to vector<1x128xf32>
    %c0_2 = arith.constant 0 : index
    %c0_3 = arith.constant 0 : index
    %2 = vector.load %arg2[%c0_2, %c0_3] : memref<128x128xf32, #tpu.memory_space<vmem>>, vector<128x128xf32>
    %cst_4 = arith.constant dense<0.000000e+00> : vector<1x128xf32>
    %3 = tpu.matmul %1, %2, %cst_4 {dimension_numbers = #tpu.dot_dimension_numbers<[1], [0], [0], [1], [0, 0, 1, 1], [], []>} : vector<1x128xf32>, vector<128x128xf32>, vector<1x128xf32> -> vector<1x128xf32>
    %4 = arith.negf %3 : vector<1x128xf32>
    %5 = math.exp %4 : vector<1x128xf32>
    %cst_5 = arith.constant 1.000000e+00 : f32
    %6 = vector.broadcast %cst_5 : f32 to vector<1x128xf32>
    %7 = arith.addf %6, %5 : vector<1x128xf32>
    %8 = arith.divf %6, %7 : vector<1x128xf32>
    %c0_6 = arith.constant 0 : index
    %c0_7 = arith.constant 0 : index
    %c0_8 = arith.constant 0 : index
    %9 = vector.load %arg1[%c0_6, %c0_7, %c0_8] : memref<1x1x128xf32, #tpu.memory_space<vmem>>, vector<1x1x128xf32>
    %10 = vector.shape_cast %8 : vector<1x128xf32> to vector<1x1x128xf32>
    %11 = arith.mulf %9, %10 : vector<1x1x128xf32>
    %c0_9 = arith.constant 0 : index
    %c0_10 = arith.constant 0 : index
    %c0_11 = arith.constant 0 : index
    %12 = vector.load %arg3[%c0_9, %c0_10, %c0_11] : memref<1x1x128xf32, #tpu.memory_space<vmem>>, vector<1x1x128xf32>
    tpu.vector_store %arg3[%c0_9, %c0_10, %c0_11], %11 {strides = array<i32>} : memref<1x1x128xf32, #tpu.memory_space<vmem>>, vector<1x1x128xf32>,
    return
  }
  func.func @transform_0(%arg0: i32) -> (i32, i32, i32) {
    %c0_i32 = arith.constant 0 : i32
    %c0_i32_0 = arith.constant 0 : i32
    %c0_i32_1 = arith.constant 0 : i32
    return %arg0, %c0_i32, %c0_i32_0 : i32, i32, i32
  }
  func.func @transform_1(%arg0: i32) -> (i32, i32) {
    %c0_i32 = arith.constant 0 : i32
    %c0_i32_0 = arith.constant 0 : i32
    %c0_i32_1 = arith.constant 0 : i32
    return %c0_i32, %c0_i32_0 : i32, i32
  }
  func.func @transform_2(%arg0: i32) -> (i32, i32, i32) {
    %c0_i32 = arith.constant 0 : i32
    %c0_i32_0 = arith.constant 0 : i32
    %c0_i32_1 = arith.constant 0 : i32
    return %arg0, %c0_i32, %c0_i32_0 : i32, i32, i32
  }
}

</mosaic_0001>

<llo_original>
// kernel: tpu_custom_call.1
$region0: #{tpu_custom_call.1}
  #allocation0 [shape = 'u32[]', space=smem, size = 0x4, offset = 0x4, fixed_abs, tag = 'smem constant byte address 0x4 - core index']
  #allocation1 [shape = 'u32[144,128]{1,0:T(1,128)}', space=vmem, size = 0x12000, scoped, tag = 'internal scratch']
  %s0 = inlined_call_operand.hbm [shape: f32[2,1,128], index: 0, kind: input, shape index: {}]
  %s1 = inlined_call_operand.hbm [shape: f32[128,128], index: 1, kind: input, shape index: {}]
  %s2 = inlined_call_operand.hbm [shape: f32[2,1,128], index: 2, kind: output, shape index: {}]
  %s3 = sld [smem:[#allocation0]]
  $region49: #{tpu_custom_call.1} parent=0
    _
  %s5 = ssub.s32 1, %s3
  %s6 = scalar_select 0, %s5, %s3
  $region1: #{tpu_custom_call.1} parent=0
    #allocation2 [shape = 'u8[1024]{0}', space=vmem, size = 0x400, scoped, tag = 'input window, operand 0']
    #allocation3 [shape = 's32[2]{0}', space=sflag, size = 0x8, scoped, tag = 'scoped memory for tpu_custom_call.1']
    #allocation4 [shape = 's32[2]{0}', space=sflag, size = 0x8, scoped, tag = 'scoped memory for tpu_custom_call.1']
    #allocation5 [shape = 'u8[65536]{0}', space=vmem, size = 0x10000, scoped, tag = 'input window, operand 1, single buffered']
    #allocation6 [shape = 's32[1]{0}', space=sflag, size = 0x4, scoped, tag = 'scoped memory for tpu_custom_call.1']
    #allocation7 [shape = 'u8[1024]{0}', space=vmem, size = 0x400, scoped, tag = 'output window, operand 0']
    %7 = vsyncpa [#allocation3], 0
    %s8 = scalar_lea.sflag [#allocation3], 1
    %9 = vsyncpa %s8, 0
    %10 = vsyncpa [#allocation6], 0
    %11 = vsyncpa [#allocation4], 0
    %s12 = scalar_lea.sflag [#allocation4], 1
    %13 = vsyncpa %s12, 0
    loop: start=0, step=1, limit=4
    $region2: #{tpu_custom_call.1} parent=1 // loop_pre_header
      _
    $region3: #{tpu_custom_call.1} parent=1 // loop_header
      %s15 = sphi 0, %s19
      %p16 = scmp.ge.s32.totalorder %s15, 4
      %s25 = sphi 0, %s27
      %s28 = sphi 0, %s25
      %s29 = sphi 0, %s28
      %s45 = sphi 0, %s29
      %s49 = sphi 0, %s49
      %s51 = sphi 0, %s49
      %s52 = sphi 0, %s51
      %s66 = sphi 0, %s52
      %s72 = sphi 0, %s74
      %s75 = sphi 0, %s72
      %s76 = sphi 0, %s75
      %s92 = sphi 0, %s76
    $region4: #{tpu_custom_call.1} parent=1 // loop_header_branch
      %18 = sbr.rel (%p16) target = $region8
    $region5: #{tpu_custom_call.1} parent=1 // loop_body
      %s20 = ssub.s32 %s15, 1
      %s21 = ssub.s32 %s15, 2
      %s22 = sadd.s32 %s15, 1
      %s23 = ssub.s32 %s15, %s22
      %p24 = scmp.eq.s32.totalorder %s23, 0
      %s26 = sadd.s32 %s25, 1
      %s27 = scalar_select %p24, %s25, %s26
      %p30 = pneg %p24
      %p31 = scmp.eq.s32.totalorder %s15, 1
      %p32 = por %p30, %p31
      %p33 = scmp.ne.s32.totalorder %s25, %s28
      %p34 = scmp.eq.s32.totalorder %s15, 0
      %p35 = por %p33, %p34
      %p36 = scmp.ne.s32.totalorder %s25, %s28
      %p37 = scmp.eq.s32.totalorder %s20, 1
      %p38 = por %p36, %p37
      %p39 = scmp.ne.s32.totalorder %s28, %s29
      %p40 = scmp.eq.s32.totalorder %s20, 0
      %p41 = por %p39, %p40
      %p42 = scmp.ne.s32.totalorder %s28, %s29
      %p43 = scmp.eq.s32.totalorder %s21, 1
      %p44 = por %p42, %p43
      %p46 = scmp.ne.s32.totalorder %s29, %s45
      %p47 = scmp.eq.s32.totalorder %s21, 0
      %p48 = por %p46, %p47
      %s50 = sadd.s32 %s49, 1
      %p53 = scmp.eq.s32.totalorder %s15, 1
      %p54 = scmp.ne.s32.totalorder %s49, %s51
      %p55 = scmp.eq.s32.totalorder %s15, 0
      %p56 = por %p54, %p55
      %p57 = scmp.ne.s32.totalorder %s49, %s51
      %p58 = scmp.eq.s32.totalorder %s20, 1
      %p59 = por %p57, %p58
      %p60 = scmp.ne.s32.totalorder %s51, %s52
      %p61 = scmp.eq.s32.totalorder %s20, 0
      %p62 = por %p60, %p61
      %p63 = scmp.ne.s32.totalorder %s51, %s52
      %p64 = scmp.eq.s32.totalorder %s21, 1
      %p65 = por %p63, %p64
      %p67 = scmp.ne.s32.totalorder %s52, %s66
      %p68 = scmp.eq.s32.totalorder %s21, 0
      %p69 = por %p67, %p68
      %s70 = ssub.s32 %s15, %s22
      %p71 = scmp.eq.s32.totalorder %s70, 0
      %s73 = sadd.s32 %s72, 1
      %s74 = scalar_select %p71, %s72, %s73
      %p77 = pneg %p71
      %p78 = scmp.eq.s32.totalorder %s15, 1
      %p79 = por %p77, %p78
      %p80 = scmp.ne.s32.totalorder %s72, %s75
      %p81 = scmp.eq.s32.totalorder %s15, 0
      %p82 = por %p80, %p81
      %p83 = scmp.ne.s32.totalorder %s72, %s75
      %p84 = scmp.eq.s32.totalorder %s20, 1
      %p85 = por %p83, %p84
      %p86 = scmp.ne.s32.totalorder %s75, %s76
      %p87 = scmp.eq.s32.totalorder %s20, 0
      %p88 = por %p86, %p87
      %p89 = scmp.ne.s32.totalorder %s75, %s76
      %p90 = scmp.eq.s32.totalorder %s21, 1
      %p91 = por %p89, %p90
      %p93 = scmp.ne.s32.totalorder %s76, %s92
      %p94 = scmp.eq.s32.totalorder %s21, 0
      %p95 = por %p93, %p94
      %p96 = scmp.le.s32.totalorder 1, %s15
      %p97 = scmp.lt.s32.totalorder %s15, 3
      %p98 = pnand %p96, %p97
      %p99 = pneg %p98
      // Predicated region
      $region9: #{tpu_custom_call.1} parent=5 // pred_check
        _
      $region10: #{tpu_custom_call.1} parent=5 // pred_check_branch
        %101 = sbr.rel (%p98) target = $region12
      $region11: #{tpu_custom_call.1} parent=5 // pred_region
        %s102 = ssub.s32 %s15, 1
        // Predicated region
        $region13: #{tpu_custom_call.1} parent=11 // pred_check
          %p103 = pneg %p62
        $region14: #{tpu_custom_call.1} parent=11 // pred_check_branch
          %105 = sbr.rel (%p103) target = $region16
        $region15: #{tpu_custom_call.1} parent=11 // pred_region
          %s107 = ssub.s32 2048, 2048
          %108 = vsyncadd [#allocation6], %s107
          %s109 = sshll.u32 [#allocation5], 4
          %s110 = int_to_ptr.vmem [resolvable:$true] %s109
          %115 = dma.hbm_to_vmem [thread:$0]  %s1, 2048, %s110, [#allocation6], 128, 128, 8
        $region16: #{tpu_custom_call.1} parent=11 // pred_fallthru
          _
      $region12: #{tpu_custom_call.1} parent=5 // pred_fallthru
        _
      %p116 = scmp.lt.s32.totalorder %s15, 2
      // Predicated region
      $region17: #{tpu_custom_call.1} parent=5 // pred_check
        %p117 = pneg %p116
      $region18: #{tpu_custom_call.1} parent=5 // pred_check_branch
        %119 = sbr.rel (%p117) target = $region20
      $region19: #{tpu_custom_call.1} parent=5 // pred_region
        // Predicated region
        $region21: #{tpu_custom_call.1} parent=19 // pred_check
          %p120 = pneg %p35
        $region22: #{tpu_custom_call.1} parent=19 // pred_check_branch
          %122 = sbr.rel (%p120) target = $region24
        $region23: #{tpu_custom_call.1} parent=19 // pred_region
          %s123 = sand.u32 %s25, 1
          %s124 = scalar_lea.sflag [#allocation3], %s123
          %s125 = sand.u32 %s25, 1
          %s126 = scalar_lea.vmem [#allocation2], %s125
          %s128 = ssub.s32 16, 16
          %129 = vsyncadd %s124, %s128
          %s130 = smul.addr %s15, 16
          %s131 = scalar_lea.hbm %s0, %s130
          %s133 = sshll.u32 %s126, 4
          %s134 = int_to_ptr.vmem [resolvable:$true] %s133
          %136 = dma.hbm_to_vmem [thread:$0]  %s131, 16, %s134, %s124
        $region24: #{tpu_custom_call.1} parent=19 // pred_fallthru
          _
      $region20: #{tpu_custom_call.1} parent=5 // pred_fallthru
        _
      %p137 = scmp.le.s32.totalorder 1, %s15
      %p138 = scmp.lt.s32.totalorder %s15, 3
      %p139 = pnand %p137, %p138
      %p140 = pneg %p139
      // Predicated region
      $region25: #{tpu_custom_call.1} parent=5 // pred_check
        _
      $region26: #{tpu_custom_call.1} parent=5 // pred_check_branch
        %142 = sbr.rel (%p139) target = $region28
      $region27: #{tpu_custom_call.1} parent=5 // pred_region
        %s143 = ssub.s32 %s15, 1
        %s144 = sand.u32 %s28, 1
        %s145 = scalar_lea.sflag [#allocation3], %s144
        %s146 = sand.u32 %s28, 1
        %s147 = scalar_lea.vmem [#allocation2], %s146
        // Predicated region
        $region29: #{tpu_custom_call.1} parent=27 // pred_check
          %p148 = pneg %p41
        $region30: #{tpu_custom_call.1} parent=27 // pred_check_branch
          %150 = sbr.rel (%p148) target = $region32
        $region31: #{tpu_custom_call.1} parent=27 // pred_region
          %151 = dma.done %s145, 16
        $region32: #{tpu_custom_call.1} parent=27 // pred_fallthru
          _
        // Predicated region
        $region33: #{tpu_custom_call.1} parent=27 // pred_check
          %p152 = pneg %p62
        $region34: #{tpu_custom_call.1} parent=27 // pred_check_branch
          %154 = sbr.rel (%p152) target = $region36
        $region35: #{tpu_custom_call.1} parent=27 // pred_region
          %155 = dma.done [#allocation6], 2048
        $region36: #{tpu_custom_call.1} parent=27 // pred_fallthru
          _
        %s156 = sand.u32 %s28, 1
        %s157 = scalar_lea.sflag [#allocation3], %s156
        %s158 = sand.u32 %s28, 1
        %s159 = scalar_lea.vmem [#allocation2], %s158
        %p160 = pneg %p41
        %p161 = pneg %p38
        %p162 = pneg %p62
        %p163 = pneg %p59
        %p164 = pneg %p88
        %p165 = pneg %p85
        %s166 = sand.u32 %s75, 1
        %s167 = scalar_lea.sflag [#allocation4], %s166
        %s168 = sand.u32 %s75, 1
        %s169 = scalar_lea.vmem [#allocation7], %s168
        %v170 = vld [vmem:[%s147] sm:$0x1]
        %v171 = vadd.f32 %v170, 0.0
        %v172 = vld [vmem:[#allocation5] sm:$0xff]
        %v173 = vld [vmem:[#allocation5 + $0x8] sm:$0xff]
        %v174 = vld [vmem:[#allocation5 + $0x10] sm:$0xff]
        %v175 = vld [vmem:[#allocation5 + $0x18] sm:$0xff]
        %v176 = vld [vmem:[#allocation5 + $0x20] sm:$0xff]
        %v177 = vld [vmem:[#allocation5 + $0x28] sm:$0xff]
        %v178 = vld [vmem:[#allocation5 + $0x30] sm:$0xff]
        %v179 = vld [vmem:[#allocation5 + $0x38] sm:$0xff]
        %v180 = vld [vmem:[#allocation5 + $0x40] sm:$0xff]
        %v181 = vld [vmem:[#allocation5 + $0x48] sm:$0xff]
        %v182 = vld [vmem:[#allocation5 + $0x50] sm:$0xff]
        %v183 = vld [vmem:[#allocation5 + $0x58] sm:$0xff]
        %v184 = vld [vmem:[#allocation5 + $0x60] sm:$0xff]
        %v185 = vld [vmem:[#allocation5 + $0x68] sm:$0xff]
        %v186 = vld [vmem:[#allocation5 + $0x70] sm:$0xff]
        %v187 = vld [vmem:[#allocation5 + $0x78] sm:$0xff]
        %188 = vmatprep.subr.mxu0 0.0
        %189 = vmatpush1.msra.mxu0 %v172
        %190 = vmatprep.subr.mxu0 0.0
        %191 = vmatpush1.msra.mxu0 %v173
        %192 = vmatprep.subr.mxu0 0.0
        %193 = vmatpush1.msra.mxu0 %v174
        %194 = vmatprep.subr.mxu0 0.0
        %195 = vmatpush1.msra.mxu0 %v175
        %196 = vmatprep.subr.mxu0 0.0
        %197 = vmatpush1.msra.mxu0 %v176
        %198 = vmatprep.subr.mxu0 0.0
        %199 = vmatpush1.msra.mxu0 %v177
        %200 = vmatprep.subr.mxu0 0.0
        %201 = vmatpush1.msra.mxu0 %v178
        %202 = vmatprep.subr.mxu0 0.0
        %203 = vmatpush1.msra.mxu0 %v179
        %204 = vmatprep.subr.mxu0 0.0
        %205 = vmatpush1.msra.mxu0 %v180
        %206 = vmatprep.subr.mxu0 0.0
        %207 = vmatpush1.msra.mxu0 %v181
        %208 = vmatprep.subr.mxu0 0.0
        %209 = vmatpush1.msra.mxu0 %v182
        %210 = vmatprep.subr.mxu0 0.0
        %211 = vmatpush1.msra.mxu0 %v183
        %212 = vmatprep.subr.mxu0 0.0
        %213 = vmatpush1.msra.mxu0 %v184
        %214 = vmatprep.subr.mxu0 0.0
        %215 = vmatpush1.msra.mxu0 %v185
        %216 = vmatprep.subr.mxu0 0.0
        %217 = vmatpush1.msra.mxu0 %v186
        %218 = vmatprep.subr.mxu0 0.0
        %219 = vmatpush1.msra.mxu0 %v187
        %220 = vmatprep.subr.mxu0 0.0
        %221 = vmatpush1.msra.mxu0 0.0
        %222 = vmatprep.subr.mxu0 0.0
        %223 = vmatpush1.msra.mxu0 0.0
        %224 = vmatprep.subr.mxu0 0.0
        %225 = vmatpush1.msra.mxu0 0.0
        %226 = vmatprep.subr.mxu0 0.0
        %227 = vmatpush1.msra.mxu0 0.0
        %228 = vmatprep.subr.mxu0 0.0
        %229 = vmatpush1.msra.mxu0 0.0
        %230 = vmatprep.subr.mxu0 0.0
        %231 = vmatpush1.msra.mxu0 0.0
        %232 = vmatprep.subr.mxu0 0.0
        %233 = vmatpush1.msra.mxu0 0.0
        %234 = vmatprep.subr.mxu0 0.0
        %235 = vmatpush1.msra.mxu0 0.0
        %236 = vmatprep.subr.mxu0 0.0
        %237 = vmatpush1.msra.mxu0 0.0
        %238 = vmatprep.subr.mxu0 0.0
        %239 = vmatpush1.msra.mxu0 0.0
        %240 = vmatprep.subr.mxu0 0.0
        %241 = vmatpush1.msra.mxu0 0.0
        %242 = vmatprep.subr.mxu0 0.0
        %243 = vmatpush1.msra.mxu0 0.0
        %244 = vmatprep.subr.mxu0 0.0
        %245 = vmatpush1.msra.mxu0 0.0
        %246 = vmatprep.subr.mxu0 0.0
        %247 = vmatpush1.msra.mxu0 0.0
        %248 = vmatprep.subr.mxu0 0.0
        %249 = vmatpush1.msra.mxu0 0.0
        %250 = vmatprep.subr.mxu0 0.0
        %251 = vmatpush1.msra.mxu0 0.0
        %252 = vmatprep.mubr.f32.mxu0 0.0
        %253 = vmatmul.mubr.f32.gmra.mrb[0].mxu0 %v171
        %v254 = vpop.f32.mrb[0].mxu0
        %v255 = vadd.f32 0.0, %v254
        %v256 = vpop.f32.mrb[0].mxu0
        %257 = vdwg.mxu0
        %v258 = vxor.u32 %v255, 2147483648
        %v259 = vmul.f32 %v258, 1.442695
        %v260 = vpow.pop %v259
        %v261 = vadd.f32 %v260, 1.0
        %v262 = vrcp.pop %v261
        %v263 = vmul.f32 1.0, %v262
        %v264 = vmul.f32 %v170, %v263
        %265 = vst [vmem:[%s169] sm:$0x1] %v264
        %s266 = sand.u32 %s75, 1
        %s267 = scalar_lea.sflag [#allocation4], %s266
        %s268 = sand.u32 %s75, 1
        %s269 = scalar_lea.vmem [#allocation7], %s268
        // Predicated region
        $region37: #{tpu_custom_call.1} parent=27 // pred_check
          %p270 = pneg %p85
        $region38: #{tpu_custom_call.1} parent=27 // pred_check_branch
          %272 = sbr.rel (%p270) target = $region40
        $region39: #{tpu_custom_call.1} parent=27 // pred_region
          %s274 = ssub.s32 16, 16
          %275 = vsyncadd %s267, %s274
          %s276 = smul.addr %s20, 16
          %s277 = scalar_lea.hbm %s2, %s276
          %s279 = sshll.u32 %s269, 4
          %s280 = int_to_ptr.vmem [resolvable:$true] %s279
          %282 = dma.vmem_to_hbm [thread:$0]  %s280, 16, %s277, %s267
        $region40: #{tpu_custom_call.1} parent=27 // pred_fallthru
          _
      $region28: #{tpu_custom_call.1} parent=5 // pred_fallthru
        _
      %p283 = scmp.le.s32.totalorder 2, %s15
      // Predicated region
      $region41: #{tpu_custom_call.1} parent=5 // pred_check
        %p284 = pneg %p283
      $region42: #{tpu_custom_call.1} parent=5 // pred_check_branch
        %286 = sbr.rel (%p284) target = $region44
      $region43: #{tpu_custom_call.1} parent=5 // pred_region
        %s287 = ssub.s32 %s15, 2
        // Predicated region
        $region45: #{tpu_custom_call.1} parent=43 // pred_check
          %p288 = pneg %p91
        $region46: #{tpu_custom_call.1} parent=43 // pred_check_branch
          %290 = sbr.rel (%p288) target = $region48
        $region47: #{tpu_custom_call.1} parent=43 // pred_region
          %s291 = sand.u32 %s76, 1
          %s292 = scalar_lea.sflag [#allocation4], %s291
          %s293 = sand.u32 %s76, 1
          %s294 = scalar_lea.vmem [#allocation7], %s293
          %295 = dma.done %s292, 16
        $region48: #{tpu_custom_call.1} parent=43 // pred_fallthru
          _
      $region44: #{tpu_custom_call.1} parent=5 // pred_fallthru
        _
    $region6: #{tpu_custom_call.1} parent=1 // loop_footer
      %s19 = sadd.s32 1, %s15
    $region7: #{tpu_custom_call.1} parent=1 // loop_footer_branch
      %14 = sbr.rel target = $region3
    $region8: #{tpu_custom_call.1} parent=1 // loop_exit
      _
    %296 = vsyncpa [#allocation3], 1
    %s297 = scalar_lea.sflag [#allocation3], 1
    %298 = vsyncpa %s297, 1
    %299 = vsyncpa [#allocation6], 1
    %300 = vsyncpa [#allocation4], 1
    %s301 = scalar_lea.sflag [#allocation4], 1
    %302 = vsyncpa %s301, 1

</llo_original>
